<compile_context>
chip_gen: v6e
topology: v6e:2x2x1
jax: 0.10.0
libtpu: 0.0.40
codegen_flags: <defaults>
</compile_context>

<pallas_src>
import functools

import jax
import jax.numpy as jnp
import numpy as np
from jax import lax
from jax.experimental import pallas as pl
from jax.experimental.pallas import tpu as pltpu


def _residual_layer_kernel(
    x_ref,        # (1, C, Tt)   bf16 : x[:, :, t]
    xs_ref,       # (1, C, Tt)   bf16 : x[:, :, t - dilation] (pre-shifted, zero padded)
    w1_ref,       # (2C, C)      bf16 : [wf tap on x[t] ; wg tap on x[t]]
    w0_ref,       # (2C, C)      bf16 : [wf tap on x[t-d] ; wg tap on x[t-d]]
    b01_ref,      # (2C, 1)      f32  : [bf ; bg]
    wout_ref,     # (C+S, C)     bf16 : [wr ; ws @ wr]
    bout_ref,     # (C+S, 1)     f32  : [br ; ws @ br + bs]
    skip_ref,     # (1, S, Tt)   f32
    res_ref,      # (1, C, Tt)   f32
    *, c: int,
):
    x = x_ref[0]          # (C, Tt) bf16
    xs = xs_ref[0]        # (C, Tt) bf16

    # Fused filter+gate dilated causal conv (k=2) as two MXU matmuls, f32 acc.
    pre = (
        jnp.dot(w1_ref[...], x, preferred_element_type=jnp.float32)
        + jnp.dot(w0_ref[...], xs, preferred_element_type=jnp.float32)
        + b01_ref[...]
    )                                                     # (2C, Tt) f32
    fx = jnp.tanh(pre[:c]) * jax.nn.sigmoid(pre[c:])      # (C, Tt)  f32

    # Fused [residual 1x1 | pre-composed skip 1x1] matmul.
    y = (
        jnp.dot(wout_ref[...], fx.astype(wout_ref.dtype),
                preferred_element_type=jnp.float32)
        + bout_ref[...]
    )                                                     # (C+S, Tt) f32

    res_ref[0] = (y[:c] + x.astype(jnp.float32)).astype(res_ref.dtype)
    skip_ref[0] = y[c:].astype(skip_ref.dtype)


def _pick_time_tile(t):
    # Largest lane-dense tile that divides T; cap at 512 (v7x VMEM headroom).
    for cand in (512, 256, 128):
        if t % cand == 0:
            return cand
    return t  # small/odd T: single full-extent block (full-dim exception)


def residual_layer_pallas(x_nct, params, dilation):
    """x_nct: (B, C, T) float32 (PyTorch NCT layout). Returns (skip, residual) in NCT."""
    b, c, t = x_nct.shape
    s = params["ws"].shape[0]  # skip_size
    wdt = jnp.bfloat16

    # --- parameter plumbing (plain JAX glue, done once by XLA) ---
    wf, wg = params["wf"], params["wg"]                       # (C, C, 2)
    w1 = jnp.concatenate([wf[:, :, 1], wg[:, :, 1]], axis=0).astype(wdt)   # (2C, C)
    w0 = jnp.concatenate([wf[:, :, 0], wg[:, :, 0]], axis=0).astype(wdt)   # (2C, C)
    b01 = jnp.concatenate([params["bf"], params["bg"]]).reshape(2 * c, 1)
    b01 = b01.astype(jnp.float32)

    wr = params["wr"][:, :, 0]                                # (C, C)
    ws = params["ws"][:, :, 0]                                # (S, C)
    ws_eff = ws @ wr                                          # skip composed through res 1x1
    bs_eff = ws @ params["br"] + params["bs"]                 # (S,)
    wout = jnp.concatenate([wr, ws_eff], axis=0).astype(wdt)  # (C+S, C)
    bout = jnp.concatenate([params["br"], bs_eff]).reshape(c + s, 1).astype(jnp.float32)

    # bf16 activations for the MXU; causal shift precomputed (handles dilation >= T).
    x_bf = x_nct.astype(wdt)
    xs_bf = jnp.pad(x_bf, ((0, 0), (0, 0), (dilation, 0)))[:, :, :t]

    tt = _pick_time_tile(t)
    nt = t // tt

    xmap = lambda bi, ti: (bi, 0, ti)
    wmap = lambda bi, ti: (0, 0)

    skip, residual = pl.pallas_call(
        functools.partial(_residual_layer_kernel, c=c),
        out_shape=(
            jax.ShapeDtypeStruct((b, s, t), jnp.float32),
            jax.ShapeDtypeStruct((b, c, t), jnp.float32),
        ),
        grid_spec=pltpu.PrefetchScalarGridSpec(
            num_scalar_prefetch=0,
            grid=(b, nt),
            in_specs=[
                pl.BlockSpec((1, c, tt), xmap),      # x
                pl.BlockSpec((1, c, tt), xmap),      # x shifted by dilation
                pl.BlockSpec((2 * c, c), wmap),      # w1 (filter|gate, tap on x[t])
                pl.BlockSpec((2 * c, c), wmap),      # w0 (filter|gate, tap on x[t-d])
                pl.BlockSpec((2 * c, 1), wmap),      # [bf; bg]
                pl.BlockSpec((c + s, c), wmap),      # [wr; ws@wr]
                pl.BlockSpec((c + s, 1), wmap),      # [br; ws@br + bs]
            ],
            out_specs=[
                pl.BlockSpec((1, s, tt), xmap),      # skip
                pl.BlockSpec((1, c, tt), xmap),      # residual
            ],
        ),
        compiler_params=pltpu.CompilerParams(
            dimension_semantics=("parallel", "parallel"),
        ),
    )(x_bf, xs_bf, w1, w0, b01, wout, bout)

    return skip, residual


# --- pure-JAX reference implementing the PyTorch module exactly (NCT layout) ---
def residual_layer_ref(x, params, dilation):
    def causal_conv(x, w, bias, d):
        dn = lax.conv_dimension_numbers(x.shape, w.shape, ("NCH", "OIH", "NCH"))
        y = lax.conv_general_dilated(
            x, w, window_strides=(1,), padding=[(d, 0)],
            rhs_dilation=(d,), dimension_numbers=dn,
        )
        return y + bias[None, :, None]

    def conv1x1(x, w, bias):
        dn = lax.conv_dimension_numbers(x.shape, w.shape, ("NCH", "OIH", "NCH"))
        y = lax.conv_general_dilated(
            x, w, window_strides=(1,), padding=[(0, 0)], dimension_numbers=dn,
        )
        return y + bias[None, :, None]

    cf = causal_conv(x, params["wf"], params["bf"], dilation)
    cg = causal_conv(x, params["wg"], params["bg"], dilation)
    fx = jnp.tanh(cf) * jax.nn.sigmoid(cg)
    fx = conv1x1(fx, params["wr"], params["br"])
    skip = conv1x1(fx, params["ws"], params["bs"])
    residual = fx + x
    return skip, residual


def init_params(key, residual_size, skip_size, kernel_size=2):
    keys = jax.random.split(key, 8)
    c, s, k = residual_size, skip_size, kernel_size
    scale2 = 1.0 / np.sqrt(c * k)
    scale1 = 1.0 / np.sqrt(c * 1)
    u = lambda kk, shape, sc: jax.random.uniform(kk, shape, jnp.float32, -sc, sc)
    return {
        "wf": u(keys[0], (c, c, k), scale2), "bf": u(keys[1], (c,), scale2),
        "wg": u(keys[2], (c, c, k), scale2), "bg": u(keys[3], (c,), scale2),
        "wr": u(keys[4], (c, c, 1), scale1), "br": u(keys[5], (c,), scale1),
        "ws": u(keys[6], (s, c, 1), scale1), "bs": u(keys[7], (s,), scale1),
    }


def _run_case(key, b, c, s, t, dil):
    kx, kp = jax.random.split(key)
    x = jax.random.normal(kx, (b, c, t), dtype=jnp.float32)   # PyTorch NCT input
    params = init_params(kp, residual_size=c, skip_size=s)

    skip, residual = residual_layer_pallas(x, params, dil)
    jax.block_until_ready((skip, residual))

    skip_ref, res_ref = residual_layer_ref(x, params, dil)
    # bf16 matmul inputs -> relaxed tolerance vs f32 reference.
    np.testing.assert_allclose(np.asarray(skip), np.asarray(skip_ref),
                               rtol=5e-2, atol=5e-2)
    np.testing.assert_allclose(np.asarray(residual), np.asarray(res_ref),
                               rtol=5e-2, atol=5e-2)


if __name__ == "__main__":
    key = jax.random.PRNGKey(0)
    k1, k2 = jax.random.split(key)

    # Small benchmark shape (single full-extent T block, 2 parallel grid points).
    _run_case(k1, b=2, c=32, s=32, t=16, dil=2)

    # Larger sequence exercising the tiled-time path (grid=(1, 2), TILE_T=512).
    _run_case(k2, b=1, c=32, s=16, t=1024, dil=8)

    print("KERNEL_OK")
</pallas_src>

<mosaic_0001>
module attributes {stable_mosaic.version = 11 : i64} {
  func.func @_residual_layer_kernel(%arg0: i32, %arg1: i32, %arg2: memref<1x32x16xbf16, #tpu.memory_space<vmem>>, %arg3: memref<1x32x16xbf16, #tpu.memory_space<vmem>>, %arg4: memref<64x32xbf16, #tpu.memory_space<vmem>>, %arg5: memref<64x32xbf16, #tpu.memory_space<vmem>>, %arg6: memref<64x1xf32, #tpu.memory_space<vmem>>, %arg7: memref<64x32xbf16, #tpu.memory_space<vmem>>, %arg8: memref<64x1xf32, #tpu.memory_space<vmem>>, %arg9: memref<1x32x16xf32, #tpu.memory_space<vmem>>, %arg10: memref<1x32x16xf32, #tpu.memory_space<vmem>>) attributes {dimension_semantics = [#tpu.dimension_semantics<parallel>, #tpu.dimension_semantics<parallel>], iteration_bounds = array<i64: 2, 1>, scalar_prefetch = 0 : i64, scratch_operands = 0 : i64, tpu.core_type = #tpu.core_type<tc>, window_params = [{transform_indices = @transform_0, window_bounds = array<i64: 1, 32, 16>}, {transform_indices = @transform_1, window_bounds = array<i64: 1, 32, 16>}, {pipeline_mode = #tpu.pipeline_mode<synchronous>, transform_indices = @transform_2, window_bounds = array<i64: 64, 32>}, {pipeline_mode = #tpu.pipeline_mode<synchronous>, transform_indices = @transform_3, window_bounds = array<i64: 64, 32>}, {pipeline_mode = #tpu.pipeline_mode<synchronous>, transform_indices = @transform_4, window_bounds = array<i64: 64, 1>}, {pipeline_mode = #tpu.pipeline_mode<synchronous>, transform_indices = @transform_5, window_bounds = array<i64: 64, 32>}, {pipeline_mode = #tpu.pipeline_mode<synchronous>, transform_indices = @transform_6, window_bounds = array<i64: 64, 1>}, {transform_indices = @transform_7, window_bounds = array<i64: 1, 32, 16>}, {transform_indices = @transform_8, window_bounds = array<i64: 1, 32, 16>}]} {
    %c0 = arith.constant 0 : index
    %c0_0 = arith.constant 0 : index
    %c0_1 = arith.constant 0 : index
    %0 = vector.load %arg2[%c0, %c0_0, %c0_1] : memref<1x32x16xbf16, #tpu.memory_space<vmem>>, vector<1x32x16xbf16>
    %1 = vector.shape_cast %0 : vector<1x32x16xbf16> to vector<32x16xbf16>
    %c0_2 = arith.constant 0 : index
    %c0_3 = arith.constant 0 : index
    %c0_4 = arith.constant 0 : index
    %2 = vector.load %arg3[%c0_2, %c0_3, %c0_4] : memref<1x32x16xbf16, #tpu.memory_space<vmem>>, vector<1x32x16xbf16>
    %3 = vector.shape_cast %2 : vector<1x32x16xbf16> to vector<32x16xbf16>
    %c0_5 = arith.constant 0 : index
    %c0_6 = arith.constant 0 : index
    %4 = vector.load %arg4[%c0_5, %c0_6] : memref<64x32xbf16, #tpu.memory_space<vmem>>, vector<64x32xbf16>
    %cst = arith.constant dense<0.000000e+00> : vector<64x16xf32>
    %5 = tpu.matmul %4, %1, %cst {dimension_numbers = #tpu.dot_dimension_numbers<[1], [0], [0], [1], [0, 0, 1, 1], [], []>} : vector<64x32xbf16>, vector<32x16xbf16>, vector<64x16xf32> -> vector<64x16xf32>
    %c0_7 = arith.constant 0 : index
    %c0_8 = arith.constant 0 : index
    %6 = vector.load %arg5[%c0_7, %c0_8] : memref<64x32xbf16, #tpu.memory_space<vmem>>, vector<64x32xbf16>
    %cst_9 = arith.constant dense<0.000000e+00> : vector<64x16xf32>
    %7 = tpu.matmul %6, %3, %cst_9 {dimension_numbers = #tpu.dot_dimension_numbers<[1], [0], [0], [1], [0, 0, 1, 1], [], []>} : vector<64x32xbf16>, vector<32x16xbf16>, vector<64x16xf32> -> vector<64x16xf32>
    %8 = arith.addf %5, %7 : vector<64x16xf32>
    %c0_10 = arith.constant 0 : index
    %c0_11 = arith.constant 0 : index
    %9 = vector.load %arg6[%c0_10, %c0_11] : memref<64x1xf32, #tpu.memory_space<vmem>>, vector<64x1xf32>
    %10 = vector.broadcast %9 : vector<64x1xf32> to vector<64x16xf32>
    %11 = arith.addf %8, %10 : vector<64x16xf32>
    %12 = vector.extract_strided_slice %11 {offsets = [0, 0], sizes = [32, 16], strides = [1, 1]} : vector<64x16xf32> to vector<32x16xf32>
    %13 = math.tanh %12 : vector<32x16xf32>
    %14 = vector.extract_strided_slice %11 {offsets = [32, 0], sizes = [32, 16], strides = [1, 1]} : vector<64x16xf32> to vector<32x16xf32>
    %15 = arith.negf %14 : vector<32x16xf32>
    %16 = math.exp %15 : vector<32x16xf32>
    %cst_12 = arith.constant 1.000000e+00 : f32
    %17 = vector.broadcast %cst_12 : f32 to vector<32x16xf32>
    %18 = arith.addf %17, %16 : vector<32x16xf32>
    %19 = arith.divf %17, %18 : vector<32x16xf32>
    %20 = arith.mulf %13, %19 : vector<32x16xf32>
    %c0_13 = arith.constant 0 : index
    %c0_14 = arith.constant 0 : index
    %21 = vector.load %arg7[%c0_13, %c0_14] : memref<64x32xbf16, #tpu.memory_space<vmem>>, vector<64x32xbf16>
    %22 = arith.truncf %20 : vector<32x16xf32> to vector<32x16xbf16>
    %cst_15 = arith.constant dense<0.000000e+00> : vector<64x16xf32>
    %23 = tpu.matmul %21, %22, %cst_15 {dimension_numbers = #tpu.dot_dimension_numbers<[1], [0], [0], [1], [0, 0, 1, 1], [], []>} : vector<64x32xbf16>, vector<32x16xbf16>, vector<64x16xf32> -> vector<64x16xf32>
    %c0_16 = arith.constant 0 : index
    %c0_17 = arith.constant 0 : index
    %24 = vector.load %arg8[%c0_16, %c0_17] : memref<64x1xf32, #tpu.memory_space<vmem>>, vector<64x1xf32>
    %25 = vector.broadcast %24 : vector<64x1xf32> to vector<64x16xf32>
    %26 = arith.addf %23, %25 : vector<64x16xf32>
    %27 = vector.extract_strided_slice %26 {offsets = [0, 0], sizes = [32, 16], strides = [1, 1]} : vector<64x16xf32> to vector<32x16xf32>
    %28 = arith.extf %1 : vector<32x16xbf16> to vector<32x16xf32>
    %29 = arith.addf %27, %28 : vector<32x16xf32>
    %c0_18 = arith.constant 0 : index
    %c0_19 = arith.constant 0 : index
    %c0_20 = arith.constant 0 : index
    %30 = vector.load %arg10[%c0_18, %c0_19, %c0_20] : memref<1x32x16xf32, #tpu.memory_space<vmem>>, vector<1x32x16xf32>
    %31 = vector.shape_cast %30 : vector<1x32x16xf32> to vector<32x16xf32>
    %32 = vector.shape_cast %29 : vector<32x16xf32> to vector<1x32x16xf32>
    tpu.vector_store %arg10[%c0_18, %c0_19, %c0_20], %32 {strides = array<i32>} : memref<1x32x16xf32, #tpu.memory_space<vmem>>, vector<1x32x16xf32>,
    %33 = vector.extract_strided_slice %26 {offsets = [32, 0], sizes = [32, 16], strides = [1, 1]} : vector<64x16xf32> to vector<32x16xf32>
    %c0_21 = arith.constant 0 : index
    %c0_22 = arith.constant 0 : index
    %c0_23 = arith.constant 0 : index
    %34 = vector.load %arg9[%c0_21, %c0_22, %c0_23] : memref<1x32x16xf32, #tpu.memory_space<vmem>>, vector<1x32x16xf32>
    %35 = vector.shape_cast %34 : vector<1x32x16xf32> to vector<32x16xf32>
    %36 = vector.shape_cast %33 : vector<32x16xf32> to vector<1x32x16xf32>
    tpu.vector_store %arg9[%c0_21, %c0_22, %c0_23], %36 {strides = array<i32>} : memref<1x32x16xf32, #tpu.memory_space<vmem>>, vector<1x32x16xf32>,
    return
  }
  func.func @transform_0(%arg0: i32, %arg1: i32) -> (i32, i32, i32) {
    %c0_i32 = arith.constant 0 : i32
    %c0_i32_0 = arith.constant 0 : i32
    return %arg0, %c0_i32, %arg1 : i32, i32, i32
  }
  func.func @transform_1(%arg0: i32, %arg1: i32) -> (i32, i32, i32) {
    %c0_i32 = arith.constant 0 : i32
    %c0_i32_0 = arith.constant 0 : i32
    return %arg0, %c0_i32, %arg1 : i32, i32, i32
  }
  func.func @transform_2(%arg0: i32, %arg1: i32) -> (i32, i32) {
    %c0_i32 = arith.constant 0 : i32
    %c0_i32_0 = arith.constant 0 : i32
    %c0_i32_1 = arith.constant 0 : i32
    return %c0_i32, %c0_i32_0 : i32, i32
  }
  func.func @transform_3(%arg0: i32, %arg1: i32) -> (i32, i32) {
    %c0_i32 = arith.constant 0 : i32
    %c0_i32_0 = arith.constant 0 : i32
    %c0_i32_1 = arith.constant 0 : i32
    return %c0_i32, %c0_i32_0 : i32, i32
  }
  func.func @transform_4(%arg0: i32, %arg1: i32) -> (i32, i32) {
    %c0_i32 = arith.constant 0 : i32
    %c0_i32_0 = arith.constant 0 : i32
    %c0_i32_1 = arith.constant 0 : i32
    return %c0_i32, %c0_i32_0 : i32, i32
  }
  func.func @transform_5(%arg0: i32, %arg1: i32) -> (i32, i32) {
    %c0_i32 = arith.constant 0 : i32
    %c0_i32_0 = arith.constant 0 : i32
    %c0_i32_1 = arith.constant 0 : i32
    return %c0_i32, %c0_i32_0 : i32, i32
  }
  func.func @transform_6(%arg0: i32, %arg1: i32) -> (i32, i32) {
    %c0_i32 = arith.constant 0 : i32
    %c0_i32_0 = arith.constant 0 : i32
    %c0_i32_1 = arith.constant 0 : i32
    return %c0_i32, %c0_i32_0 : i32, i32
  }
  func.func @transform_7(%arg0: i32, %arg1: i32) -> (i32, i32, i32) {
    %c0_i32 = arith.constant 0 : i32
    %c0_i32_0 = arith.constant 0 : i32
    return %arg0, %c0_i32, %arg1 : i32, i32, i32
  }
  func.func @transform_8(%arg0: i32, %arg1: i32) -> (i32, i32, i32) {
    %c0_i32 = arith.constant 0 : i32
    %c0_i32_0 = arith.constant 0 : i32
    return %arg0, %c0_i32, %arg1 : i32, i32, i32
  }
}

</mosaic_0001>

<llo_original>
// kernel: tpu_custom_call.1
$region0: #{tpu_custom_call.1}
  #allocation0 [shape = 'u32[]', space=smem, size = 0x4, offset = 0x4, fixed_abs, tag = 'smem constant byte address 0x4 - core index']
  #allocation1 [shape = 'u32[144,128]{1,0:T(1,128)}', space=vmem, size = 0x12000, scoped, tag = 'internal scratch']
  %s0 = inlined_call_operand.vmem [shape: bf16[2,32,16], index: 0, kind: input, shape index: {}]
  %s1 = inlined_call_operand.vmem [shape: bf16[2,32,16], index: 1, kind: input, shape index: {}]
  %s2 = inlined_call_operand.vmem [shape: bf16[64,32], index: 2, kind: input, shape index: {}]
  %s3 = inlined_call_operand.vmem [shape: bf16[64,32], index: 3, kind: input, shape index: {}]
  %s4 = inlined_call_operand.vmem [shape: f32[64,1], index: 4, kind: input, shape index: {}]
  %s5 = inlined_call_operand.vmem [shape: bf16[64,32], index: 5, kind: input, shape index: {}]
  %s6 = inlined_call_operand.vmem [shape: f32[64,1], index: 6, kind: input, shape index: {}]
  %s7 = inlined_call_operand.vmem [shape: f32[2,32,16], index: 7, kind: output, shape index: {0}]
  %s8 = inlined_call_operand.vmem [shape: f32[2,32,16], index: 8, kind: output, shape index: {1}]
  %9 = xla_tuple %s7, %s8
  %s10 = sld [smem:[#allocation0]]
  $region69: #{tpu_custom_call.1} parent=0
    _
  %s12 = ssub.s32 1, %s10
  %s13 = scalar_select 0, %s12, %s10
  loop: start=0, step=1, limit=4
  $region2: #{tpu_custom_call.1} parent=0 // loop_pre_header
    _
  $region3: #{tpu_custom_call.1} parent=0 // loop_header
    %s15 = sphi 0, %s19
    %p16 = scmp.ge.s32.totalorder %s15, 4
    %s22 = sphi 0, %s34
    %s23 = sphi 0, %s30
    %s24 = sphi 0, %s22
    %s25 = sphi 0, %s23
    %s26 = sphi 0, %s24
    %s27 = sphi 0, %s25
    %s39 = sphi 0, %s41
    %s42 = sphi 0, %s39
    %s43 = sphi 0, %s42
    %s59 = sphi 0, %s43
    %s67 = sphi 0, %s69
    %s70 = sphi 0, %s67
    %s71 = sphi 0, %s70
    %s87 = sphi 0, %s71
    %s91 = sphi 0, %s91
    %s93 = sphi 0, %s91
    %s94 = sphi 0, %s93
    %s108 = sphi 0, %s94
    %s112 = sphi 0, %s112
    %s114 = sphi 0, %s112
    %s115 = sphi 0, %s114
    %s129 = sphi 0, %s115
    %s133 = sphi 0, %s133
    %s135 = sphi 0, %s133
    %s136 = sphi 0, %s135
    %s150 = sphi 0, %s136
    %s154 = sphi 0, %s154
    %s156 = sphi 0, %s154
    %s157 = sphi 0, %s156
    %s171 = sphi 0, %s157
    %s175 = sphi 0, %s175
    %s177 = sphi 0, %s175
    %s178 = sphi 0, %s177
    %s192 = sphi 0, %s178
    %s200 = sphi 0, %s202
    %s203 = sphi 0, %s200
    %s204 = sphi 0, %s203
    %s220 = sphi 0, %s204
    %s228 = sphi 0, %s230
    %s231 = sphi 0, %s228
    %s232 = sphi 0, %s231
    %s248 = sphi 0, %s232
  $region4: #{tpu_custom_call.1} parent=0 // loop_header_branch
    %18 = sbr.rel (%p16) target = $region8
  $region5: #{tpu_custom_call.1} parent=0 // loop_body
    %s20 = ssub.s32 %s15, 1
    %s21 = ssub.s32 %s15, 2
    %s28 = sadd.s32 1, %s23
    %p29 = scmp.ge.s32.totalorder %s28, 1
    %s30 = scalar_select %p29, 0, %s28
    %s31 = sadd.s32 1, %s22
    %s32 = scalar_select %p29, %s31, %s22
    %p33 = scmp.ge.s32.totalorder %s32, 2
    %s34 = scalar_select %p33, 0, %s32
    %s35 = ssub.s32 %s22, %s34
    %s36 = ssub.s32 %s23, %s30
    %s37 = sor.u32 %s35, %s36
    %p38 = scmp.eq.s32.totalorder %s37, 0
    %s40 = sadd.s32 %s39, 1
    %s41 = scalar_select %p38, %s39, %s40
    %p44 = pneg %p38
    %p45 = scmp.eq.s32.totalorder %s15, 1
    %p46 = por %p44, %p45
    %p47 = scmp.ne.s32.totalorder %s39, %s42
    %p48 = scmp.eq.s32.totalorder %s15, 0
    %p49 = por %p47, %p48
    %p50 = scmp.ne.s32.totalorder %s39, %s42
    %p51 = scmp.eq.s32.totalorder %s20, 1
    %p52 = por %p50, %p51
    %p53 = scmp.ne.s32.totalorder %s42, %s43
    %p54 = scmp.eq.s32.totalorder %s20, 0
    %p55 = por %p53, %p54
    %p56 = scmp.ne.s32.totalorder %s42, %s43
    %p57 = scmp.eq.s32.totalorder %s21, 1
    %p58 = por %p56, %p57
    %p60 = scmp.ne.s32.totalorder %s43, %s59
    %p61 = scmp.eq.s32.totalorder %s21, 0
    %p62 = por %p60, %p61
    %s63 = ssub.s32 %s22, %s34
    %s64 = ssub.s32 %s23, %s30
    %s65 = sor.u32 %s63, %s64
    %p66 = scmp.eq.s32.totalorder %s65, 0
    %s68 = sadd.s32 %s67, 1
    %s69 = scalar_select %p66, %s67, %s68
    %p72 = pneg %p66
    %p73 = scmp.eq.s32.totalorder %s15, 1
    %p74 = por %p72, %p73
    %p75 = scmp.ne.s32.totalorder %s67, %s70
    %p76 = scmp.eq.s32.totalorder %s15, 0
    %p77 = por %p75, %p76
    %p78 = scmp.ne.s32.totalorder %s67, %s70
    %p79 = scmp.eq.s32.totalorder %s20, 1
    %p80 = por %p78, %p79
    %p81 = scmp.ne.s32.totalorder %s70, %s71
    %p82 = scmp.eq.s32.totalorder %s20, 0
    %p83 = por %p81, %p82
    %p84 = scmp.ne.s32.totalorder %s70, %s71
    %p85 = scmp.eq.s32.totalorder %s21, 1
    %p86 = por %p84, %p85
    %p88 = scmp.ne.s32.totalorder %s71, %s87
    %p89 = scmp.eq.s32.totalorder %s21, 0
    %p90 = por %p88, %p89
    %s92 = sadd.s32 %s91, 1
    %p95 = scmp.eq.s32.totalorder %s15, 1
    %p96 = scmp.ne.s32.totalorder %s91, %s93
    %p97 = scmp.eq.s32.totalorder %s15, 0
    %p98 = por %p96, %p97
    %p99 = scmp.ne.s32.totalorder %s91, %s93
    %p100 = scmp.eq.s32.totalorder %s20, 1
    %p101 = por %p99, %p100
    %p102 = scmp.ne.s32.totalorder %s93, %s94
    %p103 = scmp.eq.s32.totalorder %s20, 0
    %p104 = por %p102, %p103
    %p105 = scmp.ne.s32.totalorder %s93, %s94
    %p106 = scmp.eq.s32.totalorder %s21, 1
    %p107 = por %p105, %p106
    %p109 = scmp.ne.s32.totalorder %s94, %s108
    %p110 = scmp.eq.s32.totalorder %s21, 0
    %p111 = por %p109, %p110
    %s113 = sadd.s32 %s112, 1
    %p116 = scmp.eq.s32.totalorder %s15, 1
    %p117 = scmp.ne.s32.totalorder %s112, %s114
    %p118 = scmp.eq.s32.totalorder %s15, 0
    %p119 = por %p117, %p118
    %p120 = scmp.ne.s32.totalorder %s112, %s114
    %p121 = scmp.eq.s32.totalorder %s20, 1
    %p122 = por %p120, %p121
    %p123 = scmp.ne.s32.totalorder %s114, %s115
    %p124 = scmp.eq.s32.totalorder %s20, 0
    %p125 = por %p123, %p124
    %p126 = scmp.ne.s32.totalorder %s114, %s115
    %p127 = scmp.eq.s32.totalorder %s21, 1
    %p128 = por %p126, %p127
    %p130 = scmp.ne.s32.totalorder %s115, %s129
    %p131 = scmp.eq.s32.totalorder %s21, 0
    %p132 = por %p130, %p131
    %s134 = sadd.s32 %s133, 1
    %p137 = scmp.eq.s32.totalorder %s15, 1
    %p138 = scmp.ne.s32.totalorder %s133, %s135
    %p139 = scmp.eq.s32.totalorder %s15, 0
    %p140 = por %p138, %p139
    %p141 = scmp.ne.s32.totalorder %s133, %s135
    %p142 = scmp.eq.s32.totalorder %s20, 1
    %p143 = por %p141, %p142
    %p144 = scmp.ne.s32.totalorder %s135, %s136
    %p145 = scmp.eq.s32.totalorder %s20, 0
    %p146 = por %p144, %p145
    %p147 = scmp.ne.s32.totalorder %s135, %s136
    %p148 = scmp.eq.s32.totalorder %s21, 1
    %p149 = por %p147, %p148
    %p151 = scmp.ne.s32.totalorder %s136, %s150
    %p152 = scmp.eq.s32.totalorder %s21, 0
    %p153 = por %p151, %p152
    %s155 = sadd.s32 %s154, 1
    %p158 = scmp.eq.s32.totalorder %s15, 1
    %p159 = scmp.ne.s32.totalorder %s154, %s156
    %p160 = scmp.eq.s32.totalorder %s15, 0
    %p161 = por %p159, %p160
    %p162 = scmp.ne.s32.totalorder %s154, %s156
    %p163 = scmp.eq.s32.totalorder %s20, 1
    %p164 = por %p162, %p163
    %p165 = scmp.ne.s32.totalorder %s156, %s157
    %p166 = scmp.eq.s32.totalorder %s20, 0
    %p167 = por %p165, %p166
    %p168 = scmp.ne.s32.totalorder %s156, %s157
    %p169 = scmp.eq.s32.totalorder %s21, 1
    %p170 = por %p168, %p169
    %p172 = scmp.ne.s32.totalorder %s157, %s171
    %p173 = scmp.eq.s32.totalorder %s21, 0
    %p174 = por %p172, %p173
    %s176 = sadd.s32 %s175, 1
    %p179 = scmp.eq.s32.totalorder %s15, 1
    %p180 = scmp.ne.s32.totalorder %s175, %s177
    %p181 = scmp.eq.s32.totalorder %s15, 0
    %p182 = por %p180, %p181
    %p183 = scmp.ne.s32.totalorder %s175, %s177
    %p184 = scmp.eq.s32.totalorder %s20, 1
    %p185 = por %p183, %p184
    %p186 = scmp.ne.s32.totalorder %s177, %s178
    %p187 = scmp.eq.s32.totalorder %s20, 0
    %p188 = por %p186, %p187
    %p189 = scmp.ne.s32.totalorder %s177, %s178
    %p190 = scmp.eq.s32.totalorder %s21, 1
    %p191 = por %p189, %p190
    %p193 = scmp.ne.s32.totalorder %s178, %s192
    %p194 = scmp.eq.s32.totalorder %s21, 0
    %p195 = por %p193, %p194
    %s196 = ssub.s32 %s22, %s34
    %s197 = ssub.s32 %s23, %s30
    %s198 = sor.u32 %s196, %s197
    %p199 = scmp.eq.s32.totalorder %s198, 0
    %s201 = sadd.s32 %s200, 1
    %s202 = scalar_select %p199, %s200, %s201
    %p205 = pneg %p199
    %p206 = scmp.eq.s32.totalorder %s15, 1
    %p207 = por %p205, %p206
    %p208 = scmp.ne.s32.totalorder %s200, %s203
    %p209 = scmp.eq.s32.totalorder %s15, 0
    %p210 = por %p208, %p209
    %p211 = scmp.ne.s32.totalorder %s200, %s203
    %p212 = scmp.eq.s32.totalorder %s20, 1
    %p213 = por %p211, %p212
    %p214 = scmp.ne.s32.totalorder %s203, %s204
    %p215 = scmp.eq.s32.totalorder %s20, 0
    %p216 = por %p214, %p215
    %p217 = scmp.ne.s32.totalorder %s203, %s204
    %p218 = scmp.eq.s32.totalorder %s21, 1
    %p219 = por %p217, %p218
    %p221 = scmp.ne.s32.totalorder %s204, %s220
    %p222 = scmp.eq.s32.totalorder %s21, 0
    %p223 = por %p221, %p222
    %s224 = ssub.s32 %s22, %s34
    %s225 = ssub.s32 %s23, %s30
    %s226 = sor.u32 %s224, %s225
    %p227 = scmp.eq.s32.totalorder %s226, 0
    %s229 = sadd.s32 %s228, 1
    %s230 = scalar_select %p227, %s228, %s229
    %p233 = pneg %p227
    %p234 = scmp.eq.s32.totalorder %s15, 1
    %p235 = por %p233, %p234
    %p236 = scmp.ne.s32.totalorder %s228, %s231
    %p237 = scmp.eq.s32.totalorder %s15, 0
    %p238 = por %p236, %p237
    %p239 = scmp.ne.s32.totalorder %s228, %s231
    %p240 = scmp.eq.s32.totalorder %s20, 1
    %p241 = por %p239, %p240
    %p242 = scmp.ne.s32.totalorder %s231, %s232
    %p243 = scmp.eq.s32.totalorder %s20, 0
    %p244 = por %p242, %p243
    %p245 = scmp.ne.s32.totalorder %s231, %s232
    %p246 = scmp.eq.s32.totalorder %s21, 1
    %p247 = por %p245, %p246
    %p249 = scmp.ne.s32.totalorder %s232, %s248
    %p250 = scmp.eq.s32.totalorder %s21, 0
    %p251 = por %p249, %p250
    %p252 = scmp.le.s32.totalorder 1, %s15
    %p253 = scmp.lt.s32.totalorder %s15, 3
    %p254 = pnand %p252, %p253
    %p255 = pneg %p254
    // Predicated region
    $region9: #{tpu_custom_call.1} parent=5 // pred_check
      _
    $region10: #{tpu_custom_call.1} parent=5 // pred_check_branch
      %257 = sbr.rel (%p254) target = $region12
    $region11: #{tpu_custom_call.1} parent=5 // pred_region
      %s258 = ssub.s32 %s15, 1
      // Predicated region
      $region13: #{tpu_custom_call.1} parent=11 // pred_check
        %p259 = pneg %p104
      $region14: #{tpu_custom_call.1} parent=11 // pred_check_branch
        %261 = sbr.rel (%p259) target = $region16
      $region15: #{tpu_custom_call.1} parent=11 // pred_region
        _
      $region16: #{tpu_custom_call.1} parent=11 // pred_fallthru
        _
      // Predicated region
      $region17: #{tpu_custom_call.1} parent=11 // pred_check
        %p262 = pneg %p125
      $region18: #{tpu_custom_call.1} parent=11 // pred_check_branch
        %264 = sbr.rel (%p262) target = $region20
      $region19: #{tpu_custom_call.1} parent=11 // pred_region
        _
      $region20: #{tpu_custom_call.1} parent=11 // pred_fallthru
        _
      // Predicated region
      $region21: #{tpu_custom_call.1} parent=11 // pred_check
        %p265 = pneg %p146
      $region22: #{tpu_custom_call.1} parent=11 // pred_check_branch
        %267 = sbr.rel (%p265) target = $region24
      $region23: #{tpu_custom_call.1} parent=11 // pred_region
        _
      $region24: #{tpu_custom_call.1} parent=11 // pred_fallthru
        _
      // Predicated region
      $region25: #{tpu_custom_call.1} parent=11 // pred_check
        %p268 = pneg %p167
      $region26: #{tpu_custom_call.1} parent=11 // pred_check_branch
        %270 = sbr.rel (%p268) target = $region28
      $region27: #{tpu_custom_call.1} parent=11 // pred_region
        _
      $region28: #{tpu_custom_call.1} parent=11 // pred_fallthru
        _
      // Predicated region
      $region29: #{tpu_custom_call.1} parent=11 // pred_check
        %p271 = pneg %p188
      $region30: #{tpu_custom_call.1} parent=11 // pred_check_branch
        %273 = sbr.rel (%p271) target = $region32
      $region31: #{tpu_custom_call.1} parent=11 // pred_region
        _
      $region32: #{tpu_custom_call.1} parent=11 // pred_fallthru
        _
    $region12: #{tpu_custom_call.1} parent=5 // pred_fallthru
      _
    %p274 = scmp.lt.s32.totalorder %s15, 2
    // Predicated region
    $region33: #{tpu_custom_call.1} parent=5 // pred_check
      %p275 = pneg %p274
    $region34: #{tpu_custom_call.1} parent=5 // pred_check_branch
      %277 = sbr.rel (%p275) target = $region36
    $region35: #{tpu_custom_call.1} parent=5 // pred_region
      // Predicated region
      $region37: #{tpu_custom_call.1} parent=35 // pred_check
        %p278 = pneg %p49
      $region38: #{tpu_custom_call.1} parent=35 // pred_check_branch
        %280 = sbr.rel (%p278) target = $region40
      $region39: #{tpu_custom_call.1} parent=35 // pred_region
        %p281 = scmp.lt.s32.totalorder %s22, 1
        %s282 = scalar_select %p281, %s22, 1
        %p283 = scmp.lt.s32.totalorder %s23, 0
        %s284 = scalar_select %p283, %s23, 0
        %s285 = smul.addr %s282, 4
        %s286 = sadd.s32 %s284, %s285
        %s287 = smul.addr %s286, 4
        %s288 = scalar_lea.vmem %s0, %s287
      $region40: #{tpu_custom_call.1} parent=35 // pred_fallthru
        _
      // Predicated region
      $region41: #{tpu_custom_call.1} parent=35 // pred_check
        %p289 = pneg %p77
      $region42: #{tpu_custom_call.1} parent=35 // pred_check_branch
        %291 = sbr.rel (%p289) target = $region44
      $region43: #{tpu_custom_call.1} parent=35 // pred_region
        %p292 = scmp.lt.s32.totalorder %s22, 1
        %s293 = scalar_select %p292, %s22, 1
        %p294 = scmp.lt.s32.totalorder %s23, 0
        %s295 = scalar_select %p294, %s23, 0
        %s296 = smul.addr %s293, 4
        %s297 = sadd.s32 %s295, %s296
        %s298 = smul.addr %s297, 4
        %s299 = scalar_lea.vmem %s1, %s298
      $region44: #{tpu_custom_call.1} parent=35 // pred_fallthru
        _
    $region36: #{tpu_custom_call.1} parent=5 // pred_fallthru
      _
    %p300 = scmp.le.s32.totalorder 1, %s15
    %p301 = scmp.lt.s32.totalorder %s15, 3
    %p302 = pnand %p300, %p301
    %p303 = pneg %p302
    // Predicated region
    $region45: #{tpu_custom_call.1} parent=5 // pred_check
      _
    $region46: #{tpu_custom_call.1} parent=5 // pred_check_branch
      %305 = sbr.rel (%p302) target = $region48
    $region47: #{tpu_custom_call.1} parent=5 // pred_region
      %s306 = ssub.s32 %s15, 1
      %p307 = scmp.lt.s32.totalorder %s24, 1
      %s308 = scalar_select %p307, %s24, 1
      %p309 = scmp.lt.s32.totalorder %s25, 0
      %s310 = scalar_select %p309, %s25, 0
      %s311 = smul.addr %s308, 4
      %s312 = sadd.s32 %s310, %s311
      %s313 = smul.addr %s312, 4
      %s314 = scalar_lea.vmem %s0, %s313
      %p315 = pneg %p55
      %p316 = pneg %p52
      %p317 = scmp.lt.s32.totalorder %s24, 1
      %s318 = scalar_select %p317, %s24, 1
      %p319 = scmp.lt.s32.totalorder %s25, 0
      %s320 = scalar_select %p319, %s25, 0
      %s321 = smul.addr %s318, 4
      %s322 = sadd.s32 %s320, %s321
      %s323 = smul.addr %s322, 4
      %s324 = scalar_lea.vmem %s1, %s323
      %p325 = pneg %p83
      %p326 = pneg %p80
      %p327 = pneg %p104
      %p328 = pneg %p101
      %p329 = pneg %p125
      %p330 = pneg %p122
      %p331 = pneg %p146
      %p332 = pneg %p143
      %p333 = pneg %p167
      %p334 = pneg %p164
      %p335 = pneg %p188
      %p336 = pneg %p185
      %p337 = pneg %p216
      %p338 = pneg %p213
      %p339 = scmp.lt.s32.totalorder %s24, 1
      %s340 = scalar_select %p339, %s24, 1
      %p341 = scmp.lt.s32.totalorder %s25, 0
      %s342 = scalar_select %p341, %s25, 0
      %s343 = smul.addr %s340, 4
      %s344 = sadd.s32 %s342, %s343
      %s345 = smul.addr %s344, 8
      %s346 = scalar_lea.vmem %s7, %s345
      %p347 = pneg %p244
      %p348 = pneg %p241
      %p349 = scmp.lt.s32.totalorder %s24, 1
      %s350 = scalar_select %p349, %s24, 1
      %p351 = scmp.lt.s32.totalorder %s25, 0
      %s352 = scalar_select %p351, %s25, 0
      %s353 = smul.addr %s350, 4
      %s354 = sadd.s32 %s352, %s353
      %s355 = smul.addr %s354, 8
      %s356 = scalar_lea.vmem %s8, %s355
      %p357 = scmp.lt.s32.totalorder %s24, 1
      %s358 = scalar_select %p357, %s24, 1
      %p359 = scmp.lt.s32.totalorder %s25, 0
      %s360 = scalar_select %p359, %s25, 0
      %s361 = smul.addr %s358, 4
      %s362 = sadd.s32 %s360, %s361
      %s363 = smul.addr %s362, 4
      %s364 = scalar_lea.vmem %s0, %s363
      %p365 = scmp.lt.s32.totalorder %s24, 1
      %s366 = scalar_select %p365, %s24, 1
      %p367 = scmp.lt.s32.totalorder %s25, 0
      %s368 = scalar_select %p367, %s25, 0
      %s369 = smul.addr %s366, 4
      %s370 = sadd.s32 %s368, %s369
      %s371 = smul.addr %s370, 4
      %s372 = scalar_lea.vmem %s1, %s371
      %p373 = scmp.lt.s32.totalorder %s24, 1
      %s374 = scalar_select %p373, %s24, 1
      %p375 = scmp.lt.s32.totalorder %s25, 0
      %s376 = scalar_select %p375, %s25, 0
      %s377 = smul.addr %s374, 4
      %s378 = sadd.s32 %s376, %s377
      %s379 = smul.addr %s378, 8
      %s380 = scalar_lea.vmem %s7, %s379
      %p381 = scmp.lt.s32.totalorder %s24, 1
      %s382 = scalar_select %p381, %s24, 1
      %p383 = scmp.lt.s32.totalorder %s25, 0
      %s384 = scalar_select %p383, %s25, 0
      %s385 = smul.addr %s382, 4
      %s386 = sadd.s32 %s384, %s385
      %s387 = smul.addr %s386, 8
      %s388 = scalar_lea.vmem %s8, %s387
      %v390 = vld [vmem:[%s364] sm:$0xf]
      %v391 = vld [vmem:[%s364 + $0x4] sm:$0xf]
      %v392 = vld [vmem:[%s364 + $0x8] sm:$0xf]
      %v393 = vld [vmem:[%s364 + $0xc] sm:$0xf]
      %v394 = vld [vmem:[%s372] sm:$0xf]
      %v395 = vld [vmem:[%s372 + $0x4] sm:$0xf]
      %v396 = vld [vmem:[%s372 + $0x8] sm:$0xf]
      %v397 = vld [vmem:[%s372 + $0xc] sm:$0xf]
      %v398 = vld [vmem:[%s2] sm:$0xf]
      %v399 = vld [vmem:[%s2 + $0x4] sm:$0xf]
      %v400 = vld [vmem:[%s2 + $0x8] sm:$0xf]
      %v401 = vld [vmem:[%s2 + $0xc] sm:$0xf]
      %v402 = vld [vmem:[%s2 + $0x10] sm:$0xf]
      %v403 = vld [vmem:[%s2 + $0x14] sm:$0xf]
      %v404 = vld [vmem:[%s2 + $0x18] sm:$0xf]
      %v405 = vld [vmem:[%s2 + $0x1c] sm:$0xf]
      %v406 = vld [vmem:[%s3] sm:$0xf]
      %v407 = vld [vmem:[%s3 + $0x4] sm:$0xf]
      %v408 = vld [vmem:[%s3 + $0x8] sm:$0xf]
      %v409 = vld [vmem:[%s3 + $0xc] sm:$0xf]
      %v410 = vld [vmem:[%s3 + $0x10] sm:$0xf]
      %v411 = vld [vmem:[%s3 + $0x14] sm:$0xf]
      %v412 = vld [vmem:[%s3 + $0x18] sm:$0xf]
      %v413 = vld [vmem:[%s3 + $0x1c] sm:$0xf]
      %v422 = vunpack.c.l.b16 %v406
      %v423 = vunpack.c.l.b16 %v407
      %v424 = vunpack.c.l.b16 %v408
      %v425 = vunpack.c.l.b16 %v409
      %v426 = vunpack.c.l.b16 %v410
      %v427 = vunpack.c.l.b16 %v411
      %v428 = vunpack.c.l.b16 %v412
      %v429 = vunpack.c.l.b16 %v413
      %v430 = vpack.c.b16 %v423, %v422
      %v431 = vpack.c.b16 %v425, %v424
      %v432 = vpack.c.b16 %v427, %v426
      %v433 = vpack.c.b16 %v429, %v428
      %v438 = vunpack.c.l.b16 %v394
      %v439 = vunpack.c.l.b16 %v395
      %v440 = vunpack.c.l.b16 %v396
      %v441 = vunpack.c.l.b16 %v397
      %v442 = vpack.c.b16 %v439, %v438
      %v443 = vpack.c.b16 %v441, %v440
      %vm446 = vcmask 261120
      %v448 = vsel %vm446, %v430, 0
      %v451 = vsel %vm446, %v431, 0
      %v454 = vsel %vm446, %v432, 0
      %v457 = vsel %vm446, %v433, 0
      %459 = vmatprep.subr.bf16.mxu0 0
      %460 = vmatpush1.bf16.msra.mxu0 0
      %461 = vmatprep.subr.bf16.mxu0 0
      %462 = vmatpush1.bf16.msra.mxu0 0
      %463 = vmatprep.subr.bf16.mxu0 0
      %464 = vmatpush1.bf16.msra.mxu0 0
      %465 = vmatprep.subr.bf16.mxu0 0
      %466 = vmatpush1.bf16.msra.mxu0 0
      %467 = vmatprep.subr.bf16.mxu0 0
      %468 = vmatpush1.bf16.msra.mxu0 0
      %469 = vmatprep.subr.bf16.mxu0 0
      %470 = vmatpush1.bf16.msra.mxu0 0
      %471 = vmatprep.subr.bf16.mxu0 0
      %472 = vmatpush1.bf16.msra.mxu0 %v443
      %473 = vmatprep.subr.bf16.mxu0 0
      %474 = vmatpush1.bf16.msra.mxu0 %v442
      %475 = vmatprep.subr.bf16.mxu0 0
      %476 = vmatpush2.bf16.msra.mxu0 0
      %477 = vmatprep.subr.bf16.mxu0 0
      %478 = vmatpush2.bf16.msra.mxu0 0
      %479 = vmatprep.subr.bf16.mxu0 0
      %480 = vmatpush2.bf16.msra.mxu0 0
      %481 = vmatprep.subr.bf16.mxu0 0
      %482 = vmatpush2.bf16.msra.mxu0 0
      %483 = vmatprep.subr.bf16.mxu0 0
      %484 = vmatpush2.bf16.msra.mxu0 0
      %485 = vmatprep.subr.bf16.mxu0 0
      %486 = vmatpush2.bf16.msra.mxu0 0
      %487 = vmatprep.subr.bf16.mxu0 0
      %488 = vmatpush2.bf16.msra.mxu0 0
      %489 = vmatprep.subr.bf16.mxu0 0
      %490 = vmatpush2.bf16.msra.mxu0 0
      %491 = vmatprep.mubr.bf16.mxu0 0
      %492 = vmatmul.mubr.bf16.gmra.mxu0 %v448
      %v493 = vpop.f32.mrf.mxu0
      %v494 = vadd.f32 0.0, %v493
      %v495 = vpop.f32.mrf.mxu0
      %v496 = vpop.f32.mrf.mxu0
      %v497 = vadd.f32 0.0, %v496
      %v498 = vpop.f32.mrf.mxu0
      %499 = vmatprep.mubr.bf16.mxu0 0
      %500 = vmatmul.mubr.bf16.gmra.mxu0 %v451
      %v501 = vpop.f32.mrf.mxu0
      %v502 = vadd.f32 0.0, %v501
      %v503 = vpop.f32.mrf.mxu0
      %v504 = vpop.f32.mrf.mxu0
      %v505 = vadd.f32 0.0, %v504
      %v506 = vpop.f32.mrf.mxu0
      %507 = vmatprep.mubr.bf16.mxu0 0
      %508 = vmatmul.mubr.bf16.gmra.mxu0 %v454
      %v509 = vpop.f32.mrf.mxu0
      %v510 = vadd.f32 0.0, %v509
      %v511 = vpop.f32.mrf.mxu0
      %v512 = vpop.f32.mrf.mxu0
      %v513 = vadd.f32 0.0, %v512
      %v514 = vpop.f32.mrf.mxu0
      %515 = vmatprep.mubr.bf16.mxu0 0
      %516 = vmatmul.mubr.bf16.gmra.mxu0 %v457
      %v517 = vpop.f32.mrf.mxu0
      %v518 = vadd.f32 0.0, %v517
      %v519 = vpop.f32.mrf.mxu0
      %v520 = vpop.f32.mrf.mxu0
      %v521 = vadd.f32 0.0, %v520
      %v522 = vpop.f32.mrf.mxu0
      %523 = vdwg.mxu0
      %v532 = vunpack.c.l.b16 %v398
      %v533 = vunpack.c.l.b16 %v399
      %v534 = vunpack.c.l.b16 %v400
      %v535 = vunpack.c.l.b16 %v401
      %v536 = vunpack.c.l.b16 %v402
      %v537 = vunpack.c.l.b16 %v403
      %v538 = vunpack.c.l.b16 %v404
      %v539 = vunpack.c.l.b16 %v405
      %v540 = vpack.c.b16 %v533, %v532
      %v541 = vpack.c.b16 %v535, %v534
      %v542 = vpack.c.b16 %v537, %v536
      %v543 = vpack.c.b16 %v539, %v538
      %v548 = vunpack.c.l.b16 %v390
      %v549 = vunpack.c.l.b16 %v391
      %v550 = vunpack.c.l.b16 %v392
      %v551 = vunpack.c.l.b16 %v393
      %v552 = vpack.c.b16 %v549, %v548
      %v553 = vpack.c.b16 %v551, %v550
      %v557 = vsel %vm446, %v540, 0
      %v560 = vsel %vm446, %v541, 0
      %v563 = vsel %vm446, %v542, 0
      %v566 = vsel %vm446, %v543, 0
      %568 = vmatprep.subr.bf16.mxu0 0
      %569 = vmatpush1.bf16.msra.mxu0 0
      %570 = vmatprep.subr.bf16.mxu0 0
      %571 = vmatpush1.bf16.msra.mxu0 0
      %572 = vmatprep.subr.bf16.mxu0 0
      %573 = vmatpush1.bf16.msra.mxu0 0
      %574 = vmatprep.subr.bf16.mxu0 0
      %575 = vmatpush1.bf16.msra.mxu0 0
      %576 = vmatprep.subr.bf16.mxu0 0
      %577 = vmatpush1.bf16.msra.mxu0 0
      %578 = vmatprep.subr.bf16.mxu0 0
      %579 = vmatpush1.bf16.msra.mxu0 0
      %580 = vmatprep.subr.bf16.mxu0 0
      %581 = vmatpush1.bf16.msra.mxu0 %v553
      %582 = vmatprep.subr.bf16.mxu0 0
      %583 = vmatpush1.bf16.msra.mxu0 %v552
      %584 = vmatprep.subr.bf16.mxu0 0
      %585 = vmatpush2.bf16.msra.mxu0 0
      %586 = vmatprep.subr.bf16.mxu0 0
      %587 = vmatpush2.bf16.msra.mxu0 0
      %588 = vmatprep.subr.bf16.mxu0 0
      %589 = vmatpush2.bf16.msra.mxu0 0
      %590 = vmatprep.subr.bf16.mxu0 0
      %591 = vmatpush2.bf16.msra.mxu0 0
      %592 = vmatprep.subr.bf16.mxu0 0
      %593 = vmatpush2.bf16.msra.mxu0 0
      %594 = vmatprep.subr.bf16.mxu0 0
      %595 = vmatpush2.bf16.msra.mxu0 0
      %596 = vmatprep.subr.bf16.mxu0 0
      %597 = vmatpush2.bf16.msra.mxu0 0
      %598 = vmatprep.subr.bf16.mxu0 0
      %599 = vmatpush2.bf16.msra.mxu0 0
      %600 = vmatprep.mubr.bf16.mxu0 0
      %601 = vmatmul.mubr.bf16.gmra.mxu0 %v557
      %v602 = vpop.f32.mrf.mxu0
      %v603 = vadd.f32 %v494, %v602
      %v604 = vpop.f32.mrf.mxu0
      %v605 = vpop.f32.mrf.mxu0
      %v606 = vadd.f32 %v497, %v605
      %v607 = vpop.f32.mrf.mxu0
      %608 = vmatprep.mubr.bf16.mxu0 0
      %609 = vmatmul.mubr.bf16.gmra.mxu0 %v560
      %v610 = vpop.f32.mrf.mxu0
      %v611 = vadd.f32 %v502, %v610
      %v612 = vpop.f32.mrf.mxu0
      %v613 = vpop.f32.mrf.mxu0
      %v614 = vadd.f32 %v505, %v613
      %v615 = vpop.f32.mrf.mxu0
      %616 = vmatprep.mubr.bf16.mxu0 0
      %617 = vmatmul.mubr.bf16.gmra.mxu0 %v563
      %v618 = vpop.f32.mrf.mxu0
      %v619 = vadd.f32 %v510, %v618
      %v620 = vpop.f32.mrf.mxu0
      %v621 = vpop.f32.mrf.mxu0
      %v622 = vadd.f32 %v513, %v621
      %v623 = vpop.f32.mrf.mxu0
      %624 = vmatprep.mubr.bf16.mxu0 0
      %625 = vmatmul.mubr.bf16.gmra.mxu0 %v566
      %v626 = vpop.f32.mrf.mxu0
      %v627 = vadd.f32 %v518, %v626
      %v628 = vpop.f32.mrf.mxu0
      %v629 = vpop.f32.mrf.mxu0
      %v630 = vadd.f32 %v521, %v629
      %v631 = vpop.f32.mrf.mxu0
      %632 = vdwg.mxu0
      %v633 = vld [vmem:[%s4] sm:$0xff]
      %v634 = vld [vmem:[%s4 + $0x8] sm:$0xff]
      %v635 = vld [vmem:[%s4 + $0x10] sm:$0xff]
      %v636 = vld [vmem:[%s4 + $0x18] sm:$0xff]
      %v637 = vld [vmem:[%s4 + $0x20] sm:$0xff]
      %v638 = vld [vmem:[%s4 + $0x28] sm:$0xff]
      %v639 = vld [vmem:[%s4 + $0x30] sm:$0xff]
      %v640 = vld [vmem:[%s4 + $0x38] sm:$0xff]
      %642 = vset.pattern.permute.xlu0 0
      %643 = vperm.xlu0 %642, %v633
      %v644 = vpop.permute.xlu0 %643
      %647 = vset.pattern.permute.xlu0 0
      %648 = vperm.xlu0 %647, %v634
      %v649 = vpop.permute.xlu0 %648
      %652 = vset.pattern.permute.xlu0 0
      %653 = vperm.xlu0 %652, %v635
      %v654 = vpop.permute.xlu0 %653
      %657 = vset.pattern.permute.xlu0 0
      %658 = vperm.xlu0 %657, %v636
      %v659 = vpop.permute.xlu0 %658
      %662 = vset.pattern.permute.xlu0 0
      %663 = vperm.xlu0 %662, %v637
      %v664 = vpop.permute.xlu0 %663
      %667 = vset.pattern.permute.xlu0 0
      %668 = vperm.xlu0 %667, %v638
      %v669 = vpop.permute.xlu0 %668
      %672 = vset.pattern.permute.xlu0 0
      %673 = vperm.xlu0 %672, %v639
      %v674 = vpop.permute.xlu0 %673
      %677 = vset.pattern.permute.xlu0 0
      %678 = vperm.xlu0 %677, %v640
      %v679 = vpop.permute.xlu0 %678
      %v681 = vadd.f32 %v603, %v644
      %v682 = vadd.f32 %v606, %v649
      %v683 = vadd.f32 %v611, %v654
      %v684 = vadd.f32 %v614, %v659
      %v685 = vadd.f32 %v619, %v664
      %v686 = vadd.f32 %v622, %v669
      %v687 = vadd.f32 %v627, %v674
      %v688 = vadd.f32 %v630, %v679
      %v689 = vtanh.pop %v681
      %v690 = vtanh.pop %v682
      %v691 = vtanh.pop %v683
      %v692 = vtanh.pop %v684
      %v693 = vxor.u32 %v685, 2147483648
      %v694 = vxor.u32 %v686, 2147483648
      %v695 = vxor.u32 %v687, 2147483648
      %v696 = vxor.u32 %v688, 2147483648
      %v697 = vmul.f32 %v693, 1.442695
      %v698 = vpow.pop %v697
      %v699 = vmul.f32 %v694, 1.442695
      %v700 = vpow.pop %v699
      %v701 = vmul.f32 %v695, 1.442695
      %v702 = vpow.pop %v701
      %v703 = vmul.f32 %v696, 1.442695
      %v704 = vpow.pop %v703
      %v705 = vadd.f32 %v698, 1.0
      %v706 = vadd.f32 %v700, 1.0
      %v707 = vadd.f32 %v702, 1.0
      %v708 = vadd.f32 %v704, 1.0
      %v709 = vrcp.pop %v705
      %v710 = vmul.f32 1.0, %v709
      %v711 = vrcp.pop %v706
      %v712 = vmul.f32 1.0, %v711
      %v713 = vrcp.pop %v707
      %v714 = vmul.f32 1.0, %v713
      %v715 = vrcp.pop %v708
      %v716 = vmul.f32 1.0, %v715
      %v717 = vmul.f32 %v689, %v710
      %v718 = vmul.f32 %v690, %v712
      %v719 = vmul.f32 %v691, %v714
      %v720 = vmul.f32 %v692, %v716
      %v721 = vld [vmem:[%s5] sm:$0xf]
      %v722 = vld [vmem:[%s5 + $0x4] sm:$0xf]
      %v723 = vld [vmem:[%s5 + $0x8] sm:$0xf]
      %v724 = vld [vmem:[%s5 + $0xc] sm:$0xf]
      %v725 = vld [vmem:[%s5 + $0x10] sm:$0xf]
      %v726 = vld [vmem:[%s5 + $0x14] sm:$0xf]
      %v727 = vld [vmem:[%s5 + $0x18] sm:$0xf]
      %v728 = vld [vmem:[%s5 + $0x1c] sm:$0xf]
      %v729 = vpack.c.bf16 %v718, %v717
      %v730 = vpack.c.bf16 %v720, %v719
      %v731 = vld [vmem:[%s6] sm:$0xff]
      %v732 = vld [vmem:[%s6 + $0x8] sm:$0xff]
      %v733 = vld [vmem:[%s6 + $0x10] sm:$0xff]
      %v734 = vld [vmem:[%s6 + $0x18] sm:$0xff]
      %v735 = vld [vmem:[%s6 + $0x20] sm:$0xff]
      %v736 = vld [vmem:[%s6 + $0x28] sm:$0xff]
      %v737 = vld [vmem:[%s6 + $0x30] sm:$0xff]
      %v738 = vld [vmem:[%s6 + $0x38] sm:$0xff]
      %740 = vset.pattern.permute.xlu0 0
      %741 = vperm.xlu0 %740, %v731
      %v742 = vpop.permute.xlu0 %741
      %745 = vset.pattern.permute.xlu0 0
      %746 = vperm.xlu0 %745, %v732
      %v747 = vpop.permute.xlu0 %746
      %750 = vset.pattern.permute.xlu0 0
      %751 = vperm.xlu0 %750, %v733
      %v752 = vpop.permute.xlu0 %751
      %755 = vset.pattern.permute.xlu0 0
      %756 = vperm.xlu0 %755, %v734
      %v757 = vpop.permute.xlu0 %756
      %760 = vset.pattern.permute.xlu0 0
      %761 = vperm.xlu0 %760, %v735
      %v762 = vpop.permute.xlu0 %761
      %765 = vset.pattern.permute.xlu0 0
      %766 = vperm.xlu0 %765, %v736
      %v767 = vpop.permute.xlu0 %766
      %770 = vset.pattern.permute.xlu0 0
      %771 = vperm.xlu0 %770, %v737
      %v772 = vpop.permute.xlu0 %771
      %775 = vset.pattern.permute.xlu0 0
      %776 = vperm.xlu0 %775, %v738
      %v777 = vpop.permute.xlu0 %776
      %v787 = vunpack.c.l.b16 %v721
      %v788 = vunpack.c.l.b16 %v722
      %v789 = vunpack.c.l.b16 %v723
      %v790 = vunpack.c.l.b16 %v724
      %v791 = vunpack.c.l.b16 %v725
      %v792 = vunpack.c.l.b16 %v726
      %v793 = vunpack.c.l.b16 %v727
      %v794 = vunpack.c.l.b16 %v728
      %v795 = vpack.c.b16 %v788, %v787
      %v796 = vpack.c.b16 %v790, %v789
      %v797 = vpack.c.b16 %v792, %v791
      %v798 = vpack.c.b16 %v794, %v793
      %v800 = vsel %vm446, %v795, 0
      %v803 = vsel %vm446, %v796, 0
      %v806 = vsel %vm446, %v797, 0
      %v809 = vsel %vm446, %v798, 0
      %811 = vmatprep.subr.bf16.mxu0 0
      %812 = vmatpush1.bf16.msra.mxu0 0
      %813 = vmatprep.subr.bf16.mxu0 0
      %814 = vmatpush1.bf16.msra.mxu0 0
      %815 = vmatprep.subr.bf16.mxu0 0
      %816 = vmatpush1.bf16.msra.mxu0 0
      %817 = vmatprep.subr.bf16.mxu0 0
      %818 = vmatpush1.bf16.msra.mxu0 0
      %819 = vmatprep.subr.bf16.mxu0 0
      %820 = vmatpush1.bf16.msra.mxu0 0
      %821 = vmatprep.subr.bf16.mxu0 0
      %822 = vmatpush1.bf16.msra.mxu0 0
      %823 = vmatprep.subr.bf16.mxu0 0
      %824 = vmatpush1.bf16.msra.mxu0 %v730
      %825 = vmatprep.subr.bf16.mxu0 0
      %826 = vmatpush1.bf16.msra.mxu0 %v729
      %827 = vmatprep.subr.bf16.mxu0 0
      %828 = vmatpush2.bf16.msra.mxu0 0
      %829 = vmatprep.subr.bf16.mxu0 0
      %830 = vmatpush2.bf16.msra.mxu0 0
      %831 = vmatprep.subr.bf16.mxu0 0
      %832 = vmatpush2.bf16.msra.mxu0 0
      %833 = vmatprep.subr.bf16.mxu0 0
      %834 = vmatpush2.bf16.msra.mxu0 0
      %835 = vmatprep.subr.bf16.mxu0 0
      %836 = vmatpush2.bf16.msra.mxu0 0
      %837 = vmatprep.subr.bf16.mxu0 0
      %838 = vmatpush2.bf16.msra.mxu0 0
      %839 = vmatprep.subr.bf16.mxu0 0
      %840 = vmatpush2.bf16.msra.mxu0 0
      %841 = vmatprep.subr.bf16.mxu0 0
      %842 = vmatpush2.bf16.msra.mxu0 0
      %843 = vmatprep.mubr.bf16.mxu0 0
      %844 = vmatmul.mubr.bf16.gmra.mxu0 %v800
      %v845 = vpop.f32.mrf.mxu0
      %v846 = vadd.f32 %v742, %v845
      %v847 = vpop.f32.mrf.mxu0
      %v848 = vpop.f32.mrf.mxu0
      %v849 = vadd.f32 %v747, %v848
      %v850 = vpop.f32.mrf.mxu0
      %851 = vmatprep.mubr.bf16.mxu0 0
      %852 = vmatmul.mubr.bf16.gmra.mxu0 %v803
      %v853 = vpop.f32.mrf.mxu0
      %v854 = vadd.f32 %v752, %v853
      %v855 = vpop.f32.mrf.mxu0
      %v856 = vpop.f32.mrf.mxu0
      %v857 = vadd.f32 %v757, %v856
      %v858 = vpop.f32.mrf.mxu0
      %859 = vmatprep.mubr.bf16.mxu0 0
      %860 = vmatmul.mubr.bf16.gmra.mxu0 %v806
      %v861 = vpop.f32.mrf.mxu0
      %v862 = vadd.f32 %v762, %v861
      %v863 = vpop.f32.mrf.mxu0
      %v864 = vpop.f32.mrf.mxu0
      %v865 = vadd.f32 %v767, %v864
      %v866 = vpop.f32.mrf.mxu0
      %867 = vmatprep.mubr.bf16.mxu0 0
      %868 = vmatmul.mubr.bf16.gmra.mxu0 %v809
      %v869 = vpop.f32.mrf.mxu0
      %v870 = vadd.f32 %v772, %v869
      %v871 = vpop.f32.mrf.mxu0
      %v872 = vpop.f32.mrf.mxu0
      %v873 = vadd.f32 %v777, %v872
      %v874 = vpop.f32.mrf.mxu0
      %875 = vdwg.mxu0
      %v876 = vunpack.c.l.bf16 %v390
      %v877 = vunpack.c.l.bf16 %v391
      %v878 = vunpack.c.l.bf16 %v392
      %v879 = vunpack.c.l.bf16 %v393
      %v880 = vadd.f32 %v846, %v876
      %v881 = vadd.f32 %v849, %v877
      %v882 = vadd.f32 %v854, %v878
      %v883 = vadd.f32 %v857, %v879
      %vm884 = vcmask 130048
      %885 = vst.msk [vmem:[%s388] sm:$0xff] %vm884, %v880
      %886 = vst.msk [vmem:[%s388 + $0x8] sm:$0xff] %vm884, %v881
      %887 = vst.msk [vmem:[%s388 + $0x10] sm:$0xff] %vm884, %v882
      %888 = vst.msk [vmem:[%s388 + $0x18] sm:$0xff] %vm884, %v883
      %889 = vst.msk [vmem:[%s380] sm:$0xff] %vm884, %v862
      %890 = vst.msk [vmem:[%s380 + $0x8] sm:$0xff] %vm884, %v865
      %891 = vst.msk [vmem:[%s380 + $0x10] sm:$0xff] %vm884, %v870
      %892 = vst.msk [vmem:[%s380 + $0x18] sm:$0xff] %vm884, %v873
      %p893 = scmp.lt.s32.totalorder %s24, 1
      %s894 = scalar_select %p893, %s24, 1
      %p895 = scmp.lt.s32.totalorder %s25, 0
      %s896 = scalar_select %p895, %s25, 0
      %s897 = smul.addr %s894, 4
      %s898 = sadd.s32 %s896, %s897
      %s899 = smul.addr %s898, 8
      %s900 = scalar_lea.vmem %s7, %s899
      %p901 = scmp.lt.s32.totalorder %s24, 1
      %s902 = scalar_select %p901, %s24, 1
      %p903 = scmp.lt.s32.totalorder %s25, 0
      %s904 = scalar_select %p903, %s25, 0
      %s905 = smul.addr %s902, 4
      %s906 = sadd.s32 %s904, %s905
      %s907 = smul.addr %s906, 8
      %s908 = scalar_lea.vmem %s8, %s907
      // Predicated region
      $region49: #{tpu_custom_call.1} parent=47 // pred_check
        %p909 = pneg %p213
      $region50: #{tpu_custom_call.1} parent=47 // pred_check_branch
        %911 = sbr.rel (%p909) target = $region52
      $region51: #{tpu_custom_call.1} parent=47 // pred_region
        _
      $region52: #{tpu_custom_call.1} parent=47 // pred_fallthru
        _
      // Predicated region
      $region53: #{tpu_custom_call.1} parent=47 // pred_check
        %p912 = pneg %p241
      $region54: #{tpu_custom_call.1} parent=47 // pred_check_branch
        %914 = sbr.rel (%p912) target = $region56
      $region55: #{tpu_custom_call.1} parent=47 // pred_region
        _
      $region56: #{tpu_custom_call.1} parent=47 // pred_fallthru
        _
    $region48: #{tpu_custom_call.1} parent=5 // pred_fallthru
      _
    %p915 = scmp.le.s32.totalorder 2, %s15
    // Predicated region
    $region57: #{tpu_custom_call.1} parent=5 // pred_check
      %p916 = pneg %p915
    $region58: #{tpu_custom_call.1} parent=5 // pred_check_branch
      %918 = sbr.rel (%p916) target = $region60
    $region59: #{tpu_custom_call.1} parent=5 // pred_region
      %s919 = ssub.s32 %s15, 2
      // Predicated region
      $region61: #{tpu_custom_call.1} parent=59 // pred_check
        %p920 = pneg %p219
      $region62: #{tpu_custom_call.1} parent=59 // pred_check_branch
        %922 = sbr.rel (%p920) target = $region64
      $region63: #{tpu_custom_call.1} parent=59 // pred_region
        %p923 = scmp.lt.s32.totalorder %s26, 1
        %s924 = scalar_select %p923, %s26, 1
        %p925 = scmp.lt.s32.totalorder %s27, 0
        %s926 = scalar_select %p925, %s27, 0
        %s927 = smul.addr %s924, 4
        %s928 = sadd.s32 %s926, %s927
        %s929 = smul.addr %s928, 8
        %s930 = scalar_lea.vmem %s7, %s929
      $region64: #{tpu_custom_call.1} parent=59 // pred_fallthru
        _
      // Predicated region
      $region65: #{tpu_custom_call.1} parent=59 // pred_check
        %p931 = pneg %p247
      $region66: #{tpu_custom_call.1} parent=59 // pred_check_branch
        %933 = sbr.rel (%p931) target = $region68
      $region67: #{tpu_custom_call.1} parent=59 // pred_region
        %p934 = scmp.lt.s32.totalorder %s26, 1
        %s935 = scalar_select %p934, %s26, 1
        %p936 = scmp.lt.s32.totalorder %s27, 0
        %s937 = scalar_select %p936, %s27, 0
        %s938 = smul.addr %s935, 4
        %s939 = sadd.s32 %s937, %s938
        %s940 = smul.addr %s939, 8
        %s941 = scalar_lea.vmem %s8, %s940
      $region68: #{tpu_custom_call.1} parent=59 // pred_fallthru
        _
    $region60: #{tpu_custom_call.1} parent=5 // pred_fallthru
      _
  $region6: #{tpu_custom_call.1} parent=0 // loop_footer
    %s19 = sadd.s32 1, %s15
  $region7: #{tpu_custom_call.1} parent=0 // loop_footer_branch
    %14 = sbr.rel target = $region3
  $region8: #{tpu_custom_call.1} parent=0 // loop_exit
    _

</llo_original>
